<compile_context>
chip_gen: v7x
topology: tpu7x:2x2x1
jax: 0.10.0
libtpu: 0.0.40
codegen_flags: <defaults>
</compile_context>

<pallas_src>
import jax
import jax.numpy as jnp
from jax.experimental import pallas as pl
from jax.experimental.pallas import tpu as pltpu


def _value_net_kernel(x_ref, w1_ref, b1_ref, w2_ref, b2_ref, w3_ref, b3_ref,
                      o_ref):
    """One TB-row tile of the MLP.

    x_ref : [TB, D_in] f32      w1_ref: [D_in, H] bf16   b1_ref: [1, H] f32
    w2_ref: [H, H]     bf16     b2_ref: [1, H]    f32
    w3_ref: [1, H]     bf16     b3_ref: [1, 1]    f32
    o_ref : [1, TB]    f32      (lane-dense: batch on the lane axis)
    """
    x = x_ref[...].astype(jnp.bfloat16)

    # Layer 1: Linear + ReLU  (bf16 operands, f32 accumulation on the MXU).
    h1 = jnp.dot(x, w1_ref[...], preferred_element_type=jnp.float32)
    h1 = jnp.maximum(h1 + b1_ref[...], 0.0)

    # Layer 2: Linear + ReLU.
    h2 = jnp.dot(h1.astype(jnp.bfloat16), w2_ref[...],
                 preferred_element_type=jnp.float32)
    h2 = jnp.maximum(h2 + b2_ref[...], 0.0)

    # Layer 3: H -> 1 projection, computed transposed: contract w3 [1, H] with
    # h2 [TB, H] along H so the result is [1, TB] with batch on the lane axis.
    # This yields an unmasked lane-dense store and fills MXU columns with TB
    # instead of the 1-of-256-column N=1 matmul of the naive formulation.
    v = jax.lax.dot_general(
        w3_ref[...], h2.astype(jnp.bfloat16),
        dimension_numbers=(((1,), (1,)), ((), ())),
        preferred_element_type=jnp.float32)
    o_ref[...] = (v + b3_ref[...]).astype(o_ref.dtype)


def _round_up(x, m):
    return ((x + m - 1) // m) * m


def value_network_forward(state, params, *, block_b=512):
    """state: [B, D_in] float32 -> [B] float32 (squeeze(-1) applied)."""
    w1, b1, w2, b2, w3, b3 = params
    B, d_in = state.shape
    hidden = w1.shape[1]

    # Batch tile: largest tile <= block_b, multiple of 8 (f32 sublane rule).
    tb = min(block_b, _round_up(B, 8))
    b_pad = _round_up(B, tb)
    if b_pad != B:
        state = jnp.pad(state, ((0, b_pad - B), (0, 0)))
    num_blocks = b_pad // tb

    def pinned(r, c):
        # Constant block index -> operand stays VMEM-resident across steps.
        return pl.BlockSpec((r, c), lambda i: (0, 0))

    flops = 2 * b_pad * (d_in * hidden + hidden * hidden + hidden)
    bytes_accessed = (state.size * state.dtype.itemsize
                      + sum(a.size * a.dtype.itemsize for a in params)
                      + b_pad * 4)

    out = pl.pallas_call(
        _value_net_kernel,
        out_shape=jax.ShapeDtypeStruct((1, b_pad), jnp.float32),
        grid=(num_blocks,),
        in_specs=[
            pl.BlockSpec((tb, d_in), lambda i: (i, 0)),      # x: streamed
            pinned(d_in, hidden),                            # w1
            pinned(1, hidden),                               # b1
            pinned(hidden, hidden),                          # w2
            pinned(1, hidden),                               # b2
            pinned(1, hidden),                               # w3 (row vector)
            pinned(1, 1),                                    # b3
        ],
        out_specs=pl.BlockSpec((1, tb), lambda i: (0, i)),   # lane-dense
        compiler_params=pltpu.CompilerParams(
            dimension_semantics=("parallel",),
            vmem_limit_bytes=32 * 1024 * 1024),
        cost_estimate=pl.CostEstimate(
            flops=flops, transcendentals=0, bytes_accessed=bytes_accessed),
    )(state, w1, b1, w2, b2, w3, b3)

    # squeeze(-1) + unpad: glue, outside the kernel.
    return out[0, :B]


def init_params(key, input_size, hidden_size):
    """PyTorch-Linear-style init (U(-1/sqrt(fan_in), +)); weights stored bf16
    as [in, out] (transposed vs PyTorch), biases f32."""
    k1, k2, k3, k4, k5, k6 = jax.random.split(key, 6)

    def lin(kw, kb, fan_in, fan_out):
        bound = 1.0 / (fan_in ** 0.5)
        w = jax.random.uniform(kw, (fan_in, fan_out), jnp.float32, -bound, bound)
        b = jax.random.uniform(kb, (1, fan_out), jnp.float32, -bound, bound)
        return w, b

    w1, b1 = lin(k1, k2, input_size, hidden_size)
    w2, b2 = lin(k3, k4, hidden_size, hidden_size)
    w3, b3 = lin(k5, k6, hidden_size, 1)
    w3 = w3.reshape(1, hidden_size)           # store final weight as [1, H]
    return (w1.astype(jnp.bfloat16), b1,
            w2.astype(jnp.bfloat16), b2,
            w3.astype(jnp.bfloat16), b3)


def reference_forward(state, params):
    """Pure-JAX f32 reference (weights upcast from bf16 storage)."""
    w1, b1, w2, b2, w3, b3 = params
    w1 = w1.astype(jnp.float32)
    w2 = w2.astype(jnp.float32)
    w3 = w3.astype(jnp.float32)
    h1 = jnp.maximum(state @ w1 + b1, 0.0)
    h2 = jnp.maximum(h1 @ w2 + b2, 0.0)
    return (h2 @ w3.T + b3)[:, 0]


if __name__ == "__main__":
    input_size = 32
    hidden_size = 128

    key = jax.random.PRNGKey(0)
    k_params, k_small, k_big = jax.random.split(key, 3)
    params = init_params(k_params, input_size, hidden_size)

    fwd = jax.jit(value_network_forward)

    # Small PPO-style batch: single block, no grid streaming.
    state_small = jax.random.normal(k_small, (8, input_size), jnp.float32)
    out_small = jax.block_until_ready(fwd(state_small, params))
    ref_small = reference_forward(state_small, params)
    assert out_small.shape == (8,), out_small.shape
    assert jnp.allclose(out_small, ref_small, atol=5e-2, rtol=5e-2), (
        out_small, ref_small)

    # Larger batch: exercises batch tiling (TB=512), padding to 1024, resident
    # weights across grid steps, and the lane-dense multi-block output path.
    state_big = jax.random.normal(k_big, (1000, input_size), jnp.float32)
    out_big = jax.block_until_ready(fwd(state_big, params))
    ref_big = reference_forward(state_big, params)
    assert out_big.shape == (1000,), out_big.shape
    assert jnp.allclose(out_big, ref_big, atol=5e-2, rtol=5e-2), (
        jnp.max(jnp.abs(out_big - ref_big)))

    print("KERNEL_OK")
</pallas_src>

<mosaic_0001>
module attributes {stable_mosaic.version = 11 : i64} {
  func.func @_value_net_kernel(%arg0: i32, %arg1: memref<8x32xf32, #tpu.memory_space<vmem>>, %arg2: memref<32x128xbf16, #tpu.memory_space<vmem>>, %arg3: memref<1x128xf32, #tpu.memory_space<vmem>>, %arg4: memref<128x128xbf16, #tpu.memory_space<vmem>>, %arg5: memref<1x128xf32, #tpu.memory_space<vmem>>, %arg6: memref<1x128xbf16, #tpu.memory_space<vmem>>, %arg7: memref<1x1xf32, #tpu.memory_space<vmem>>, %arg8: memref<1x8xf32, #tpu.memory_space<vmem>>) attributes {dimension_semantics = [#tpu.dimension_semantics<parallel>], iteration_bounds = array<i64: 1>, scalar_prefetch = 0 : i64, scratch_operands = 0 : i64, tpu.core_type = #tpu.core_type<tc>, window_params = [{transform_indices = @transform_0, window_bounds = array<i64: 8, 32>}, {pipeline_mode = #tpu.pipeline_mode<synchronous>, transform_indices = @transform_1, window_bounds = array<i64: 32, 128>}, {pipeline_mode = #tpu.pipeline_mode<synchronous>, transform_indices = @transform_2, window_bounds = array<i64: 1, 128>}, {pipeline_mode = #tpu.pipeline_mode<synchronous>, transform_indices = @transform_3, window_bounds = array<i64: 128, 128>}, {pipeline_mode = #tpu.pipeline_mode<synchronous>, transform_indices = @transform_4, window_bounds = array<i64: 1, 128>}, {pipeline_mode = #tpu.pipeline_mode<synchronous>, transform_indices = @transform_5, window_bounds = array<i64: 1, 128>}, {pipeline_mode = #tpu.pipeline_mode<synchronous>, transform_indices = @transform_6, window_bounds = array<i64: 1, 1>}, {transform_indices = @transform_7, window_bounds = array<i64: 1, 8>}]} {
    %c0 = arith.constant 0 : index
    %c0_0 = arith.constant 0 : index
    %0 = vector.load %arg1[%c0, %c0_0] : memref<8x32xf32, #tpu.memory_space<vmem>>, vector<8x32xf32>
    %1 = arith.truncf %0 : vector<8x32xf32> to vector<8x32xbf16>
    %c0_1 = arith.constant 0 : index
    %c0_2 = arith.constant 0 : index
    %2 = vector.load %arg2[%c0_1, %c0_2] : memref<32x128xbf16, #tpu.memory_space<vmem>>, vector<32x128xbf16>
    %cst = arith.constant dense<0.000000e+00> : vector<8x128xf32>
    %3 = tpu.matmul %1, %2, %cst {dimension_numbers = #tpu.dot_dimension_numbers<[1], [0], [0], [1], [0, 0, 1, 1], [], []>} : vector<8x32xbf16>, vector<32x128xbf16>, vector<8x128xf32> -> vector<8x128xf32>
    %c0_3 = arith.constant 0 : index
    %c0_4 = arith.constant 0 : index
    %4 = vector.load %arg3[%c0_3, %c0_4] : memref<1x128xf32, #tpu.memory_space<vmem>>, vector<1x128xf32>
    %5 = vector.broadcast %4 : vector<1x128xf32> to vector<8x128xf32>
    %6 = arith.addf %3, %5 : vector<8x128xf32>
    %cst_5 = arith.constant 0.000000e+00 : f32
    %7 = vector.broadcast %cst_5 : f32 to vector<8x128xf32>
    %8 = arith.maximumf %6, %7 : vector<8x128xf32>
    %9 = arith.truncf %8 : vector<8x128xf32> to vector<8x128xbf16>
    %c0_6 = arith.constant 0 : index
    %c0_7 = arith.constant 0 : index
    %10 = vector.load %arg4[%c0_6, %c0_7] : memref<128x128xbf16, #tpu.memory_space<vmem>>, vector<128x128xbf16>
    %cst_8 = arith.constant dense<0.000000e+00> : vector<8x128xf32>
    %11 = tpu.matmul %9, %10, %cst_8 {dimension_numbers = #tpu.dot_dimension_numbers<[1], [0], [0], [1], [0, 0, 1, 1], [], []>} : vector<8x128xbf16>, vector<128x128xbf16>, vector<8x128xf32> -> vector<8x128xf32>
    %c0_9 = arith.constant 0 : index
    %c0_10 = arith.constant 0 : index
    %12 = vector.load %arg5[%c0_9, %c0_10] : memref<1x128xf32, #tpu.memory_space<vmem>>, vector<1x128xf32>
    %13 = vector.broadcast %12 : vector<1x128xf32> to vector<8x128xf32>
    %14 = arith.addf %11, %13 : vector<8x128xf32>
    %cst_11 = arith.constant 0.000000e+00 : f32
    %15 = vector.broadcast %cst_11 : f32 to vector<8x128xf32>
    %16 = arith.maximumf %14, %15 : vector<8x128xf32>
    %c0_12 = arith.constant 0 : index
    %c0_13 = arith.constant 0 : index
    %17 = vector.load %arg6[%c0_12, %c0_13] : memref<1x128xbf16, #tpu.memory_space<vmem>>, vector<1x128xbf16>
    %18 = arith.truncf %16 : vector<8x128xf32> to vector<8x128xbf16>
    %cst_14 = arith.constant dense<0.000000e+00> : vector<1x8xf32>
    %19 = tpu.matmul %17, %18, %cst_14 {dimension_numbers = #tpu.dot_dimension_numbers<[1], [1], [0], [0], [0, 0, 1, 0], [], []>} : vector<1x128xbf16>, vector<8x128xbf16>, vector<1x8xf32> -> vector<1x8xf32>
    %c0_15 = arith.constant 0 : index
    %c0_16 = arith.constant 0 : index
    %20 = vector.load %arg7[%c0_15, %c0_16] : memref<1x1xf32, #tpu.memory_space<vmem>>, vector<1x1xf32>
    %21 = vector.broadcast %20 : vector<1x1xf32> to vector<1x8xf32>
    %22 = arith.addf %19, %21 : vector<1x8xf32>
    %c0_17 = arith.constant 0 : index
    %c0_18 = arith.constant 0 : index
    %23 = vector.load %arg8[%c0_17, %c0_18] : memref<1x8xf32, #tpu.memory_space<vmem>>, vector<1x8xf32>
    tpu.vector_store %arg8[%c0_17, %c0_18], %22 {strides = array<i32>} : memref<1x8xf32, #tpu.memory_space<vmem>>, vector<1x8xf32>,
    return
  }
  func.func @transform_0(%arg0: i32) -> (i32, i32) {
    %c0_i32 = arith.constant 0 : i32
    %c0_i32_0 = arith.constant 0 : i32
    return %arg0, %c0_i32 : i32, i32
  }
  func.func @transform_1(%arg0: i32) -> (i32, i32) {
    %c0_i32 = arith.constant 0 : i32
    %c0_i32_0 = arith.constant 0 : i32
    %c0_i32_1 = arith.constant 0 : i32
    return %c0_i32, %c0_i32_0 : i32, i32
  }
  func.func @transform_2(%arg0: i32) -> (i32, i32) {
    %c0_i32 = arith.constant 0 : i32
    %c0_i32_0 = arith.constant 0 : i32
    %c0_i32_1 = arith.constant 0 : i32
    return %c0_i32, %c0_i32_0 : i32, i32
  }
  func.func @transform_3(%arg0: i32) -> (i32, i32) {
    %c0_i32 = arith.constant 0 : i32
    %c0_i32_0 = arith.constant 0 : i32
    %c0_i32_1 = arith.constant 0 : i32
    return %c0_i32, %c0_i32_0 : i32, i32
  }
  func.func @transform_4(%arg0: i32) -> (i32, i32) {
    %c0_i32 = arith.constant 0 : i32
    %c0_i32_0 = arith.constant 0 : i32
    %c0_i32_1 = arith.constant 0 : i32
    return %c0_i32, %c0_i32_0 : i32, i32
  }
  func.func @transform_5(%arg0: i32) -> (i32, i32) {
    %c0_i32 = arith.constant 0 : i32
    %c0_i32_0 = arith.constant 0 : i32
    %c0_i32_1 = arith.constant 0 : i32
    return %c0_i32, %c0_i32_0 : i32, i32
  }
  func.func @transform_6(%arg0: i32) -> (i32, i32) {
    %c0_i32 = arith.constant 0 : i32
    %c0_i32_0 = arith.constant 0 : i32
    %c0_i32_1 = arith.constant 0 : i32
    return %c0_i32, %c0_i32_0 : i32, i32
  }
  func.func @transform_7(%arg0: i32) -> (i32, i32) {
    %c0_i32 = arith.constant 0 : i32
    %c0_i32_0 = arith.constant 0 : i32
    return %c0_i32, %arg0 : i32, i32
  }
}

</mosaic_0001>

<llo_original>
// kernel: value_network_forward.1
$region0: #{value_network_forward.1}
  #allocation0 [shape = 'u32[]', space=smem, size = 0x4, offset = 0x4, fixed_abs, tag = 'smem constant byte address 0x4 - core index']
  #allocation1 [shape = 'u32[144,128]{1,0:T(1,128)}', space=vmem, size = 0x12000, scoped, tag = 'internal scratch']
  #allocation2 [shape = 'f32[1,1]{1,0:T(1,128)S(1)}', space=vmem, size = 0x200, scoped, tag = 'scoped memory for value_network_forward.1']
  %s0 = inlined_call_operand.hbm [shape: f32[8,32], index: 0, kind: input, shape index: {}]
  %s1 = inlined_call_operand.hbm [shape: bf16[32,128], index: 1, kind: input, shape index: {}]
  %s2 = inlined_call_operand.vmem [shape: f32[1,128], index: 2, kind: input, shape index: {}]
  %s3 = inlined_call_operand.hbm [shape: bf16[128,128], index: 3, kind: input, shape index: {}]
  %s4 = inlined_call_operand.vmem [shape: f32[1,128], index: 4, kind: input, shape index: {}]
  %s5 = inlined_call_operand.vmem [shape: bf16[1,128], index: 5, kind: input, shape index: {}]
  %s6 = inlined_call_operand.<no memory space> [shape: f32[1,1], index: 6, kind: input, shape index: {}]
  %s7 = inlined_call_operand.hbm [shape: f32[1,8], index: 7, kind: output, shape index: {}]
  %s8 = sld [smem:[#allocation0]]
  $region50: #{value_network_forward.1} parent=0
    _
  %s10 = ssub.s32 1, %s8
  %s11 = scalar_select 0, %s10, %s8
  %v12 = vstv %s6
  %13 = vst [vmem:[#allocation2] sm:$0x1] %v12
  $region1: #{value_network_forward.1} parent=0
    #allocation3 [shape = 'u8[4096]{0}', space=vmem, size = 0x1000, scoped, tag = 'input window, operand 0, single buffered']
    #allocation4 [shape = 's32[1]{0}', space=sflag, size = 0x4, scoped, tag = 'scoped memory for value_network_forward.1']
    #allocation5 [shape = 's32[1]{0}', space=sflag, size = 0x4, scoped, tag = 'scoped memory for value_network_forward.1']
    #allocation6 [shape = 'u8[8192]{0}', space=vmem, size = 0x2000, scoped, tag = 'input window, operand 1, single buffered']
    #allocation7 [shape = 's32[1]{0}', space=sflag, size = 0x4, scoped, tag = 'scoped memory for value_network_forward.1']
    #allocation8 [shape = 'u8[32768]{0}', space=vmem, size = 0x8000, scoped, tag = 'input window, operand 3, single buffered']
    #allocation9 [shape = 'u8[512]{0}', space=vmem, size = 0x400, scoped, tag = 'output window, operand 0, single buffered']
    %14 = vsyncpa [#allocation4], 0
    %15 = vsyncpa [#allocation7], 0
    %16 = vsyncpa [#allocation5], 0
    // Predicated region
    $region2: #{value_network_forward.1} parent=1 // pred_check
      _
    $region3: #{value_network_forward.1} parent=1 // pred_check_branch
      %18 = sbr.rel (0) target = $region5
    $region4: #{value_network_forward.1} parent=1 // pred_region
      %s20 = ssub.s32 128, 128
      %21 = vsyncadd [#allocation4], %s20
      %s23 = sshll.u32 [#allocation3], 4
      %s24 = int_to_ptr.vmem [resolvable:$true] %s23
      %26 = dma.hbm_to_vmem [thread:$0]  %s0, 128, %s24, [#allocation4]
    $region5: #{value_network_forward.1} parent=1 // pred_fallthru
      _
    // Predicated region
    $region6: #{value_network_forward.1} parent=1 // pred_check
      _
    $region7: #{value_network_forward.1} parent=1 // pred_check_branch
      %28 = sbr.rel (0) target = $region9
    $region8: #{value_network_forward.1} parent=1 // pred_region
      %s30 = ssub.s32 256, 256
      %31 = vsyncadd [#allocation7], %s30
      %s32 = sshll.u32 [#allocation6], 4
      %s33 = int_to_ptr.vmem [resolvable:$true] %s32
      %38 = dma.hbm_to_vmem [thread:$0]  %s1, 256, %s33, [#allocation7], 64, 64, 4
    $region9: #{value_network_forward.1} parent=1 // pred_fallthru
      _
    // Predicated region
    $region10: #{value_network_forward.1} parent=1 // pred_check
      _
    $region11: #{value_network_forward.1} parent=1 // pred_check_branch
      %40 = sbr.rel (0) target = $region13
    $region12: #{value_network_forward.1} parent=1 // pred_region
      _
    $region13: #{value_network_forward.1} parent=1 // pred_fallthru
      _
    // Predicated region
    $region14: #{value_network_forward.1} parent=1 // pred_check
      _
    $region15: #{value_network_forward.1} parent=1 // pred_check_branch
      %42 = sbr.rel (0) target = $region17
    $region16: #{value_network_forward.1} parent=1 // pred_region
      %s44 = ssub.s32 1024, 1024
      %45 = vsyncadd [#allocation7], %s44
      %s46 = sshll.u32 [#allocation8], 4
      %s47 = int_to_ptr.vmem [resolvable:$true] %s46
      %52 = dma.hbm_to_vmem [thread:$0]  %s3, 1024, %s47, [#allocation7], 64, 64, 4
    $region17: #{value_network_forward.1} parent=1 // pred_fallthru
      _
    // Predicated region
    $region18: #{value_network_forward.1} parent=1 // pred_check
      _
    $region19: #{value_network_forward.1} parent=1 // pred_check_branch
      %54 = sbr.rel (0) target = $region21
    $region20: #{value_network_forward.1} parent=1 // pred_region
      _
    $region21: #{value_network_forward.1} parent=1 // pred_fallthru
      _
    // Predicated region
    $region22: #{value_network_forward.1} parent=1 // pred_check
      _
    $region23: #{value_network_forward.1} parent=1 // pred_check_branch
      %56 = sbr.rel (0) target = $region25
    $region24: #{value_network_forward.1} parent=1 // pred_region
      _
    $region25: #{value_network_forward.1} parent=1 // pred_fallthru
      _
    // Predicated region
    $region26: #{value_network_forward.1} parent=1 // pred_check
      _
    $region27: #{value_network_forward.1} parent=1 // pred_check_branch
      %58 = sbr.rel (0) target = $region29
    $region28: #{value_network_forward.1} parent=1 // pred_region
      _
    $region29: #{value_network_forward.1} parent=1 // pred_fallthru
      _
    // Predicated region
    $region30: #{value_network_forward.1} parent=1 // pred_check
      _
    $region31: #{value_network_forward.1} parent=1 // pred_check_branch
      %60 = sbr.rel (0) target = $region33
    $region32: #{value_network_forward.1} parent=1 // pred_region
      %61 = dma.done [#allocation4], 128
    $region33: #{value_network_forward.1} parent=1 // pred_fallthru
      _
    // Predicated region
    $region34: #{value_network_forward.1} parent=1 // pred_check
      _
    $region35: #{value_network_forward.1} parent=1 // pred_check_branch
      %63 = sbr.rel (0) target = $region37
    $region36: #{value_network_forward.1} parent=1 // pred_region
      %64 = dma.done [#allocation7], 256
    $region37: #{value_network_forward.1} parent=1 // pred_fallthru
      _
    // Predicated region
    $region38: #{value_network_forward.1} parent=1 // pred_check
      _
    $region39: #{value_network_forward.1} parent=1 // pred_check_branch
      %66 = sbr.rel (0) target = $region41
    $region40: #{value_network_forward.1} parent=1 // pred_region
      %67 = dma.done [#allocation7], 1024
    $region41: #{value_network_forward.1} parent=1 // pred_fallthru
      _
    %v69 = vld [vmem:[#allocation3] sm:$0xff]
    %v70 = vpack.c.bf16 %v69, %v69
    %v71 = vld [vmem:[#allocation6] sm:$0xf]
    %v72 = vld [vmem:[#allocation6 + $0x4] sm:$0xf]
    %v73 = vld [vmem:[#allocation6 + $0x8] sm:$0xf]
    %v74 = vld [vmem:[#allocation6 + $0xc] sm:$0xf]
    %v75 = vld [vmem:[%s2] sm:$0x1]
    %v77 = vlaneseq
    %v78 = vshrl.u32 %v77, 7
    %v79 = vsub.s32 0, %v78
    %v80 = vrot.slane %v75, %v79
    %v86 = vunpack.c.l.b16 %v71
    %v87 = vunpack.c.l.b16 %v72
    %v88 = vunpack.c.l.b16 %v73
    %v89 = vunpack.c.l.b16 %v74
    %v90 = vpack.c.b16 %v87, %v86
    %v91 = vpack.c.b16 %v89, %v88
    %vm94 = vcmask 261120
    %v96 = vsel %vm94, %v70, 0
    %98 = vmatprep.subr.bf16.mxu0 0
    %99 = vmatpush1.bf16.msra.mxu0 %v90
    %100 = vmatprep.subr.bf16.mxu0 0
    %101 = vmatpush1.bf16.msra.mxu0 %v91
    %102 = vmatprep.subr.bf16.mxu0 0
    %103 = vmatpush1.bf16.msra.mxu0 0
    %104 = vmatprep.subr.bf16.mxu0 0
    %105 = vmatpush1.bf16.msra.mxu0 0
    %106 = vmatprep.subr.bf16.mxu0 0
    %107 = vmatpush1.bf16.msra.mxu0 0
    %108 = vmatprep.subr.bf16.mxu0 0
    %109 = vmatpush1.bf16.msra.mxu0 0
    %110 = vmatprep.subr.bf16.mxu0 0
    %111 = vmatpush1.bf16.msra.mxu0 0
    %112 = vmatprep.subr.bf16.mxu0 0
    %113 = vmatpush1.bf16.msra.mxu0 0
    %114 = vmatprep.subr.bf16.mxu0 0
    %115 = vmatpush1.bf16.msra.mxu0 0
    %116 = vmatprep.subr.bf16.mxu0 0
    %117 = vmatpush1.bf16.msra.mxu0 0
    %118 = vmatprep.subr.bf16.mxu0 0
    %119 = vmatpush1.bf16.msra.mxu0 0
    %120 = vmatprep.subr.bf16.mxu0 0
    %121 = vmatpush1.bf16.msra.mxu0 0
    %122 = vmatprep.subr.bf16.mxu0 0
    %123 = vmatpush1.bf16.msra.mxu0 0
    %124 = vmatprep.subr.bf16.mxu0 0
    %125 = vmatpush1.bf16.msra.mxu0 0
    %126 = vmatprep.subr.bf16.mxu0 0
    %127 = vmatpush1.bf16.msra.mxu0 0
    %128 = vmatprep.subr.bf16.mxu0 0
    %129 = vmatpush1.bf16.msra.mxu0 0
    %130 = vmatprep.mubr.bf16.mxu0 0
    %131 = vmatmul.mubr.bf16.gmra.mrb[0].mxu0 %v96
    %v132 = vpop.f32.mrb[0].mxu0
    %v133 = vadd.f32 %v80, %v132
    %v134 = vpop.f32.mrb[0].mxu0
    %v135 = vpop.f32.mrb[0].mxu0
    %v136 = vpop.f32.mrb[0].mxu0
    %137 = vdwg.mxu0
    %v138 = vmax.f32 %v133, 0.0
    %v139 = vpack.c.bf16 %v138, %v138
    %v140 = vld [vmem:[#allocation8] sm:$0xf]
    %v141 = vld [vmem:[#allocation8 + $0x4] sm:$0xf]
    %v142 = vld [vmem:[#allocation8 + $0x8] sm:$0xf]
    %v143 = vld [vmem:[#allocation8 + $0xc] sm:$0xf]
    %v144 = vld [vmem:[#allocation8 + $0x10] sm:$0xf]
    %v145 = vld [vmem:[#allocation8 + $0x14] sm:$0xf]
    %v146 = vld [vmem:[#allocation8 + $0x18] sm:$0xf]
    %v147 = vld [vmem:[#allocation8 + $0x1c] sm:$0xf]
    %v148 = vld [vmem:[#allocation8 + $0x20] sm:$0xf]
    %v149 = vld [vmem:[#allocation8 + $0x24] sm:$0xf]
    %v150 = vld [vmem:[#allocation8 + $0x28] sm:$0xf]
    %v151 = vld [vmem:[#allocation8 + $0x2c] sm:$0xf]
    %v152 = vld [vmem:[#allocation8 + $0x30] sm:$0xf]
    %v153 = vld [vmem:[#allocation8 + $0x34] sm:$0xf]
    %v154 = vld [vmem:[#allocation8 + $0x38] sm:$0xf]
    %v155 = vld [vmem:[#allocation8 + $0x3c] sm:$0xf]
    %v156 = vld [vmem:[%s4] sm:$0x1]
    %v158 = vlaneseq
    %v159 = vshrl.u32 %v158, 7
    %v160 = vsub.s32 0, %v159
    %v161 = vrot.slane %v156, %v160
    %v179 = vunpack.c.l.b16 %v140
    %v180 = vunpack.c.l.b16 %v141
    %v181 = vunpack.c.l.b16 %v142
    %v182 = vunpack.c.l.b16 %v143
    %v183 = vunpack.c.l.b16 %v144
    %v184 = vunpack.c.l.b16 %v145
    %v185 = vunpack.c.l.b16 %v146
    %v186 = vunpack.c.l.b16 %v147
    %v187 = vunpack.c.l.b16 %v148
    %v188 = vunpack.c.l.b16 %v149
    %v189 = vunpack.c.l.b16 %v150
    %v190 = vunpack.c.l.b16 %v151
    %v191 = vunpack.c.l.b16 %v152
    %v192 = vunpack.c.l.b16 %v153
    %v193 = vunpack.c.l.b16 %v154
    %v194 = vunpack.c.l.b16 %v155
    %v195 = vpack.c.b16 %v180, %v179
    %v196 = vpack.c.b16 %v182, %v181
    %v197 = vpack.c.b16 %v184, %v183
    %v198 = vpack.c.b16 %v186, %v185
    %v199 = vpack.c.b16 %v188, %v187
    %v200 = vpack.c.b16 %v190, %v189
    %v201 = vpack.c.b16 %v192, %v191
    %v202 = vpack.c.b16 %v194, %v193
    %211 = vmatprep.subr.bf16.mxu0 0
    %212 = vmatpush1.bf16.msra.mxu0 %v195
    %213 = vmatprep.subr.bf16.mxu0 0
    %214 = vmatpush1.bf16.msra.mxu0 %v196
    %215 = vmatprep.subr.bf16.mxu0 0
    %216 = vmatpush1.bf16.msra.mxu0 %v197
    %217 = vmatprep.subr.bf16.mxu0 0
    %218 = vmatpush1.bf16.msra.mxu0 %v198
    %219 = vmatprep.subr.bf16.mxu0 0
    %220 = vmatpush1.bf16.msra.mxu0 %v199
    %221 = vmatprep.subr.bf16.mxu0 0
    %222 = vmatpush1.bf16.msra.mxu0 %v200
    %223 = vmatprep.subr.bf16.mxu0 0
    %224 = vmatpush1.bf16.msra.mxu0 %v201
    %225 = vmatprep.subr.bf16.mxu0 0
    %226 = vmatpush1.bf16.msra.mxu0 %v202
    %227 = vmatprep.subr.bf16.mxu0 0
    %228 = vmatpush1.bf16.msra.mxu0 0
    %229 = vmatprep.subr.bf16.mxu0 0
    %230 = vmatpush1.bf16.msra.mxu0 0
    %231 = vmatprep.subr.bf16.mxu0 0
    %232 = vmatpush1.bf16.msra.mxu0 0
    %233 = vmatprep.subr.bf16.mxu0 0
    %234 = vmatpush1.bf16.msra.mxu0 0
    %235 = vmatprep.subr.bf16.mxu0 0
    %236 = vmatpush1.bf16.msra.mxu0 0
    %237 = vmatprep.subr.bf16.mxu0 0
    %238 = vmatpush1.bf16.msra.mxu0 0
    %239 = vmatprep.subr.bf16.mxu0 0
    %240 = vmatpush1.bf16.msra.mxu0 0
    %241 = vmatprep.subr.bf16.mxu0 0
    %242 = vmatpush1.bf16.msra.mxu0 0
    %243 = vmatprep.mubr.bf16.mxu0 0
    %244 = vmatmul.mubr.bf16.gmra.mrb[0].mxu0 %v139
    %v245 = vpop.f32.mrb[0].mxu0
    %v246 = vadd.f32 %v161, %v245
    %v247 = vpop.f32.mrb[0].mxu0
    %v248 = vpop.f32.mrb[0].mxu0
    %v249 = vpop.f32.mrb[0].mxu0
    %250 = vdwg.mxu0
    %v251 = vmax.f32 %v246, 0.0
    %v252 = vld [vmem:[%s5] sm:$0x1]
    %v253 = vpack.c.bf16 %v251, %v251
    %v254 = vld [vmem:[#allocation2] sm:$0x1]
    %256 = vset.pattern.permute.xlu0 0
    %257 = vperm.xlu0 %256, %v254
    %v258 = vpop.permute.xlu0 %257
    %v260 = vlaneseq
    %v261 = vshrl.u32 %v260, 7
    %v262 = vsub.s32 0, %v261
    %v263 = vrot.slane %v258, %v262
    %264 = vmatprep.subr.bf16.mxu0 0
    %265 = vmatpush1.bf16.xpose.msra.mxu0 %v253
    %266 = vmatprep.subr.bf16.mxu0 0
    %267 = vmatpush1.bf16.xpose.msra.mxu0 0
    %268 = vmatprep.subr.bf16.mxu0 0
    %269 = vmatpush1.bf16.xpose.msra.mxu0 0
    %270 = vmatprep.subr.bf16.mxu0 0
    %271 = vmatpush1.bf16.xpose.msra.mxu0 0
    %272 = vmatprep.subr.bf16.mxu0 0
    %273 = vmatpush1.bf16.xpose.msra.mxu0 0
    %274 = vmatprep.subr.bf16.mxu0 0
    %275 = vmatpush1.bf16.xpose.msra.mxu0 0
    %276 = vmatprep.subr.bf16.mxu0 0
    %277 = vmatpush1.bf16.xpose.msra.mxu0 0
    %278 = vmatprep.subr.bf16.mxu0 0
    %279 = vmatpush1.bf16.xpose.msra.mxu0 0
    %280 = vmatprep.subr.bf16.mxu0 0
    %281 = vmatpush1.bf16.xpose.msra.mxu0 0
    %282 = vmatprep.subr.bf16.mxu0 0
    %283 = vmatpush1.bf16.xpose.msra.mxu0 0
    %284 = vmatprep.subr.bf16.mxu0 0
    %285 = vmatpush1.bf16.xpose.msra.mxu0 0
    %286 = vmatprep.subr.bf16.mxu0 0
    %287 = vmatpush1.bf16.xpose.msra.mxu0 0
    %288 = vmatprep.subr.bf16.mxu0 0
    %289 = vmatpush1.bf16.xpose.msra.mxu0 0
    %290 = vmatprep.subr.bf16.mxu0 0
    %291 = vmatpush1.bf16.xpose.msra.mxu0 0
    %292 = vmatprep.subr.bf16.mxu0 0
    %293 = vmatpush1.bf16.xpose.msra.mxu0 0
    %294 = vmatprep.subr.bf16.mxu0 0
    %295 = vmatpush1.bf16.xpose.msra.mxu0 0
    %296 = vmatprep.mubr.bf16.mxu0 0
    %297 = vmatmul.mubr.bf16.gmra.mrb[0].mxu0 %v252
    %v298 = vpop.f32.mrb[0].mxu0
    %v299 = vadd.f32 %v263, %v298
    %v300 = vpop.f32.mrb[0].mxu0
    %v301 = vpop.f32.mrb[0].mxu0
    %v302 = vpop.f32.mrb[0].mxu0
    %303 = vdwg.mxu0
    %vm304 = vcmask 57344
    %305 = vst.msk [vmem:[#allocation9] sm:$0x1] %vm304, %v299
    // Predicated region
    $region42: #{value_network_forward.1} parent=1 // pred_check
      _
    $region43: #{value_network_forward.1} parent=1 // pred_check_branch
      %307 = sbr.rel (0) target = $region45
    $region44: #{value_network_forward.1} parent=1 // pred_region
      %s309 = ssub.s32 16, 16
      %310 = vsyncadd [#allocation5], %s309
      %s312 = sshll.u32 [#allocation9], 4
      %s313 = int_to_ptr.vmem [resolvable:$true] %s312
      %315 = dma.vmem_to_hbm [thread:$0]  %s313, 16, %s7, [#allocation5]
    $region45: #{value_network_forward.1} parent=1 // pred_fallthru
      _
    // Predicated region
    $region46: #{value_network_forward.1} parent=1 // pred_check
      _
    $region47: #{value_network_forward.1} parent=1 // pred_check_branch
      %317 = sbr.rel (0) target = $region49
    $region48: #{value_network_forward.1} parent=1 // pred_region
      %318 = dma.done [#allocation5], 16
    $region49: #{value_network_forward.1} parent=1 // pred_fallthru
      _
    %319 = vsyncpa [#allocation4], 1
    %320 = vsyncpa [#allocation7], 1
    %321 = vsyncpa [#allocation5], 1

</llo_original>
